<compile_context>
chip_gen: v5e
topology: v5e:2x2
jax: 0.10.0
libtpu: 0.0.40
codegen_flags: <defaults>
</compile_context>

<pallas_src>
import jax
import jax.numpy as jnp
from jax.experimental import pallas as pl
from jax.experimental.pallas import tpu as pltpu

IN_FEATURES = 1000
NUM_CLASSES = 20
N_PAD = 128          # lane-dense padded output width (unmasked vst)
MAX_TILE_B = 1024    # batch tile cap; double-buffered bf16 feats ~4 MB
_B_ALIGN = 16        # bf16 packs 16 rows per sublane tile -> 16-aligned tiles


def _round_up(x, m):
    return (x + m - 1) // m * m


def _head_kernel(x_ref, w_ref, b_ref, o_ref):
    # x_ref : (tile_b, 1000) bf16  -- backbone features for this batch tile
    # w_ref : (1000, N_PAD)  bf16  -- pre-transposed, zero-padded Linear weight
    # b_ref : (1, N_PAD)     f32   -- zero-padded bias row
    # o_ref : (tile_b, N_PAD) f32
    y = jnp.dot(x_ref[...], w_ref[...], preferred_element_type=jnp.float32)
    o_ref[...] = jnp.maximum(y + b_ref[...], 0.0)  # F.relu


def prepare_head_params(weight, bias, n_pad=N_PAD):
    """One-time prep of the frozen nn.Linear(1000, num_classes) params.

    weight: (num_classes, 1000) f32 (PyTorch convention)
    bias  : (num_classes,)      f32
    Returns (w_t, b2, num_classes):
      w_t : (1000, n_pad) bf16  -- transposed + zero-padded columns
      b2  : (1, n_pad)    f32   -- zero-padded bias row
    """
    nc, k = weight.shape
    n_pad = max(n_pad, _round_up(nc, 128))
    w_t = jnp.zeros((k, n_pad), jnp.bfloat16)
    w_t = w_t.at[:, :nc].set(weight.T.astype(jnp.bfloat16))
    b2 = jnp.zeros((1, n_pad), jnp.float32)
    b2 = b2.at[:, :nc].set(bias.astype(jnp.float32))
    return w_t, b2, nc


def inception_v2_head(feats, w_t, b2, num_classes):
    """relu(feats @ W^T + b) — the InceptionV2.forward tail.

    feats: (B, 1000) bf16  — output of the (frozen) InceptionResNetV2 backbone
                             (emit bf16 upstream; avoids a 2x HBM read here)
    w_t  : (1000, N_PAD) bf16  — from prepare_head_params
    b2   : (1, N_PAD)    f32   — from prepare_head_params
    """
    B, K = feats.shape
    N = w_t.shape[1]

    # Batch tiling: no padding copy — Pallas drops OOB rows of the ragged
    # last block (safe because rows are independent in this matmul).
    tile_b = min(MAX_TILE_B, _round_up(B, _B_ALIGN))
    if B >= 2 * _B_ALIGN:
        # Guarantee >= 2 grid steps so v7x's second TensorCore gets work
        # (neutral on the single-TC v5e/v6e).
        tile_b = min(tile_b, _round_up(pl.cdiv(B, 2), _B_ALIGN))
    grid = (pl.cdiv(B, tile_b),)

    out = pl.pallas_call(
        _head_kernel,
        out_shape=jax.ShapeDtypeStruct((B, N), jnp.float32),
        grid=grid,
        in_specs=[
            pl.BlockSpec((tile_b, K), lambda i: (i, 0)),   # batch-tiled feats
            pl.BlockSpec((K, N), lambda i: (0, 0)),        # VMEM-resident W
            pl.BlockSpec((1, N), lambda i: (0, 0)),        # VMEM-resident bias
        ],
        out_specs=pl.BlockSpec((tile_b, N), lambda i: (i, 0)),
        compiler_params=pltpu.CompilerParams(
            dimension_semantics=("parallel",)),
    )(feats, w_t, b2)

    return out[:, :num_classes]


if __name__ == "__main__":
    key = jax.random.PRNGKey(0)
    k_x, k_w, k_b = jax.random.split(key, 3)

    batch = 2
    # Backbone output features (stand-in for self.model.forward(x)); the
    # backbone is assumed to emit bf16 directly.
    feats = jax.random.normal(
        k_x, (batch, IN_FEATURES), dtype=jnp.float32).astype(jnp.bfloat16)

    # Deterministic nn.Linear(1000, 20) init: U(-1/sqrt(in), 1/sqrt(in)).
    bound = 1.0 / (IN_FEATURES ** 0.5)
    weight = jax.random.uniform(
        k_w, (NUM_CLASSES, IN_FEATURES), jnp.float32, -bound, bound)
    bias = jax.random.uniform(
        k_b, (NUM_CLASSES,), jnp.float32, -bound, bound)

    # One-time (frozen-param) prep: transpose + pad + bf16 cast.
    w_t, b2, n_classes = prepare_head_params(weight, bias)

    out = inception_v2_head(feats, w_t, b2, n_classes)
    out = jax.block_until_ready(out)

    # Reference in plain JAX, using the same bf16-rounded operands the kernel
    # sees (bf16 x bf16 products are exact in f32; only accumulation order
    # differs).
    feats_f32 = feats.astype(jnp.float32)
    w_bf = weight.astype(jnp.bfloat16).astype(jnp.float32)
    ref = jnp.maximum(feats_f32 @ w_bf.T + bias, 0.0)

    assert out.shape == (batch, n_classes), out.shape
    assert jnp.allclose(out, ref, atol=1e-3, rtol=1e-3), (
        float(jnp.max(jnp.abs(out - ref))))

    print("KERNEL_OK")
</pallas_src>

<mosaic_0001>
module attributes {stable_mosaic.version = 11 : i64} {
  func.func @_head_kernel(%arg0: i32, %arg1: memref<16x1000xbf16, #tpu.memory_space<vmem>>, %arg2: memref<1000x128xbf16, #tpu.memory_space<vmem>>, %arg3: memref<1x128xf32, #tpu.memory_space<vmem>>, %arg4: memref<16x128xf32, #tpu.memory_space<vmem>>) attributes {dimension_semantics = [#tpu.dimension_semantics<parallel>], iteration_bounds = array<i64: 1>, scalar_prefetch = 0 : i64, scratch_operands = 0 : i64, tpu.core_type = #tpu.core_type<tc>, window_params = [{transform_indices = @transform_0, window_bounds = array<i64: 16, 1000>}, {pipeline_mode = #tpu.pipeline_mode<synchronous>, transform_indices = @transform_1, window_bounds = array<i64: 1000, 128>}, {pipeline_mode = #tpu.pipeline_mode<synchronous>, transform_indices = @transform_2, window_bounds = array<i64: 1, 128>}, {transform_indices = @transform_3, window_bounds = array<i64: 16, 128>}]} {
    %c0 = arith.constant 0 : index
    %c0_0 = arith.constant 0 : index
    %0 = vector.load %arg1[%c0, %c0_0] : memref<16x1000xbf16, #tpu.memory_space<vmem>>, vector<16x1000xbf16>
    %c0_1 = arith.constant 0 : index
    %c0_2 = arith.constant 0 : index
    %1 = vector.load %arg2[%c0_1, %c0_2] : memref<1000x128xbf16, #tpu.memory_space<vmem>>, vector<1000x128xbf16>
    %cst = arith.constant dense<0.000000e+00> : vector<16x128xf32>
    %2 = tpu.matmul %0, %1, %cst {dimension_numbers = #tpu.dot_dimension_numbers<[1], [0], [0], [1], [0, 0, 1, 1], [], []>} : vector<16x1000xbf16>, vector<1000x128xbf16>, vector<16x128xf32> -> vector<16x128xf32>
    %c0_3 = arith.constant 0 : index
    %c0_4 = arith.constant 0 : index
    %3 = vector.load %arg3[%c0_3, %c0_4] : memref<1x128xf32, #tpu.memory_space<vmem>>, vector<1x128xf32>
    %4 = vector.broadcast %3 : vector<1x128xf32> to vector<16x128xf32>
    %5 = arith.addf %2, %4 : vector<16x128xf32>
    %cst_5 = arith.constant 0.000000e+00 : f32
    %6 = vector.broadcast %cst_5 : f32 to vector<16x128xf32>
    %7 = arith.maximumf %5, %6 : vector<16x128xf32>
    %c0_6 = arith.constant 0 : index
    %c0_7 = arith.constant 0 : index
    %8 = vector.load %arg4[%c0_6, %c0_7] : memref<16x128xf32, #tpu.memory_space<vmem>>, vector<16x128xf32>
    tpu.vector_store %arg4[%c0_6, %c0_7], %7 {strides = array<i32>} : memref<16x128xf32, #tpu.memory_space<vmem>>, vector<16x128xf32>,
    return
  }
  func.func @transform_0(%arg0: i32) -> (i32, i32) {
    %c0_i32 = arith.constant 0 : i32
    %c0_i32_0 = arith.constant 0 : i32
    return %arg0, %c0_i32 : i32, i32
  }
  func.func @transform_1(%arg0: i32) -> (i32, i32) {
    %c0_i32 = arith.constant 0 : i32
    %c0_i32_0 = arith.constant 0 : i32
    %c0_i32_1 = arith.constant 0 : i32
    return %c0_i32, %c0_i32_0 : i32, i32
  }
  func.func @transform_2(%arg0: i32) -> (i32, i32) {
    %c0_i32 = arith.constant 0 : i32
    %c0_i32_0 = arith.constant 0 : i32
    %c0_i32_1 = arith.constant 0 : i32
    return %c0_i32, %c0_i32_0 : i32, i32
  }
  func.func @transform_3(%arg0: i32) -> (i32, i32) {
    %c0_i32 = arith.constant 0 : i32
    %c0_i32_0 = arith.constant 0 : i32
    return %arg0, %c0_i32 : i32, i32
  }
}

</mosaic_0001>

<llo_original>
// kernel: tpu_custom_call.1
$region0: #{tpu_custom_call.1}
  #allocation0 [shape = 'u32[]', space=smem, size = 0x4, offset = 0x4, fixed_abs, tag = 'smem constant byte address 0x4 - core index']
  #allocation1 [shape = 'u32[72,128]{1,0:T(1,128)}', space=vmem, size = 0x9000, scoped, tag = 'internal scratch']
  %s0 = inlined_call_operand.hbm [shape: bf16[2,1000], index: 0, kind: input, shape index: {}]
  %s1 = inlined_call_operand.hbm [shape: bf16[1000,128], index: 1, kind: input, shape index: {}]
  %s2 = inlined_call_operand.vmem [shape: f32[1,128], index: 2, kind: input, shape index: {}]
  %s3 = inlined_call_operand.hbm [shape: f32[2,128], index: 3, kind: output, shape index: {}]
  %s4 = sld [smem:[#allocation0]]
  $region30: #{tpu_custom_call.1} parent=0
    _
  %s6 = ssub.s32 1, %s4
  %s7 = scalar_select 0, %s6, %s4
  $region1: #{tpu_custom_call.1} parent=0
    #allocation2 [shape = 'u8[32768]{0}', space=vmem, size = 0x8000, scoped, tag = 'input window, operand 0, single buffered']
    #allocation3 [shape = 's32[1]{0}', space=sflag, size = 0x4, scoped, tag = 'scoped memory for tpu_custom_call.1']
    #allocation4 [shape = 's32[1]{0}', space=sflag, size = 0x4, scoped, tag = 'scoped memory for tpu_custom_call.1']
    #allocation5 [shape = 'u8[256000]{0}', space=vmem, size = 0x3e800, scoped, tag = 'input window, operand 1, single buffered']
    #allocation6 [shape = 's32[1]{0}', space=sflag, size = 0x4, scoped, tag = 'scoped memory for tpu_custom_call.1']
    #allocation7 [shape = 'u8[8192]{0}', space=vmem, size = 0x2000, scoped, tag = 'output window, operand 0, single buffered']
    %8 = vsyncpa [#allocation3], 0
    %9 = vsyncpa [#allocation6], 0
    %10 = vsyncpa [#allocation4], 0
    // Predicated region
    $region2: #{tpu_custom_call.1} parent=1 // pred_check
      _
    $region3: #{tpu_custom_call.1} parent=1 // pred_check_branch
      %12 = sbr.rel (0) target = $region5
    $region4: #{tpu_custom_call.1} parent=1 // pred_region
      %14 = vsyncadd [#allocation3], 896
      %s15 = sshll.u32 %s0, 4
      %s16 = int_to_ptr.hbm [resolvable:$true] %s15
      %s17 = sshll.u32 [#allocation2], 4
      %s18 = int_to_ptr.vmem [resolvable:$true] %s17
      %23 = dma.hbm_to_vmem [thread:$0]  %s16, 128, %s18, [#allocation3], 128, 128, 8
    $region5: #{tpu_custom_call.1} parent=1 // pred_fallthru
      _
    // Predicated region
    $region6: #{tpu_custom_call.1} parent=1 // pred_check
      _
    $region7: #{tpu_custom_call.1} parent=1 // pred_check_branch
      %25 = sbr.rel (0) target = $region9
    $region8: #{tpu_custom_call.1} parent=1 // pred_region
      %27 = vsyncadd [#allocation6], 0
      %s28 = sshll.u32 %s1, 4
      %s29 = int_to_ptr.hbm [resolvable:$true] %s28
      %s30 = sshll.u32 [#allocation5], 4
      %s31 = int_to_ptr.vmem [resolvable:$true] %s30
      %36 = dma.hbm_to_vmem [thread:$0]  %s29, 8000, %s31, [#allocation6], 64, 64, 4
    $region9: #{tpu_custom_call.1} parent=1 // pred_fallthru
      _
    // Predicated region
    $region10: #{tpu_custom_call.1} parent=1 // pred_check
      _
    $region11: #{tpu_custom_call.1} parent=1 // pred_check_branch
      %38 = sbr.rel (0) target = $region13
    $region12: #{tpu_custom_call.1} parent=1 // pred_region
      _
    $region13: #{tpu_custom_call.1} parent=1 // pred_fallthru
      _
    // Predicated region
    $region14: #{tpu_custom_call.1} parent=1 // pred_check
      _
    $region15: #{tpu_custom_call.1} parent=1 // pred_check_branch
      %40 = sbr.rel (0) target = $region17
    $region16: #{tpu_custom_call.1} parent=1 // pred_region
      %42 = dma.done [#allocation3], 1024
    $region17: #{tpu_custom_call.1} parent=1 // pred_fallthru
      _
    // Predicated region
    $region18: #{tpu_custom_call.1} parent=1 // pred_check
      _
    $region19: #{tpu_custom_call.1} parent=1 // pred_check_branch
      %44 = sbr.rel (0) target = $region21
    $region20: #{tpu_custom_call.1} parent=1 // pred_region
      %46 = dma.done [#allocation6], 8000
    $region21: #{tpu_custom_call.1} parent=1 // pred_fallthru
      _
    %v48 = vld [vmem:[#allocation2] sm:$0xff]
    %v49 = vld [vmem:[#allocation2 + $0x8] sm:$0xff]
    %v50 = vld [vmem:[#allocation2 + $0x10] sm:$0xff]
    %v51 = vld [vmem:[#allocation2 + $0x18] sm:$0xff]
    %v52 = vld [vmem:[#allocation2 + $0x20] sm:$0xff]
    %v53 = vld [vmem:[#allocation2 + $0x28] sm:$0xff]
    %v54 = vld [vmem:[#allocation2 + $0x30] sm:$0xff]
    %v55 = vld [vmem:[#allocation2 + $0x38] sm:$0xff]
    %v56 = vld [vmem:[#allocation5] sm:$0xf]
    %v57 = vld [vmem:[#allocation5 + $0x4] sm:$0xf]
    %v58 = vld [vmem:[#allocation5 + $0x8] sm:$0xf]
    %v59 = vld [vmem:[#allocation5 + $0xc] sm:$0xf]
    %v60 = vld [vmem:[#allocation5 + $0x10] sm:$0xf]
    %v61 = vld [vmem:[#allocation5 + $0x14] sm:$0xf]
    %v62 = vld [vmem:[#allocation5 + $0x18] sm:$0xf]
    %v63 = vld [vmem:[#allocation5 + $0x1c] sm:$0xf]
    %v64 = vld [vmem:[#allocation5 + $0x20] sm:$0xf]
    %v65 = vld [vmem:[#allocation5 + $0x24] sm:$0xf]
    %v66 = vld [vmem:[#allocation5 + $0x28] sm:$0xf]
    %v67 = vld [vmem:[#allocation5 + $0x2c] sm:$0xf]
    %v68 = vld [vmem:[#allocation5 + $0x30] sm:$0xf]
    %v69 = vld [vmem:[#allocation5 + $0x34] sm:$0xf]
    %v70 = vld [vmem:[#allocation5 + $0x38] sm:$0xf]
    %v71 = vld [vmem:[#allocation5 + $0x3c] sm:$0xf]
    %v72 = vld [vmem:[#allocation5 + $0x40] sm:$0xf]
    %v73 = vld [vmem:[#allocation5 + $0x44] sm:$0xf]
    %v74 = vld [vmem:[#allocation5 + $0x48] sm:$0xf]
    %v75 = vld [vmem:[#allocation5 + $0x4c] sm:$0xf]
    %v76 = vld [vmem:[#allocation5 + $0x50] sm:$0xf]
    %v77 = vld [vmem:[#allocation5 + $0x54] sm:$0xf]
    %v78 = vld [vmem:[#allocation5 + $0x58] sm:$0xf]
    %v79 = vld [vmem:[#allocation5 + $0x5c] sm:$0xf]
    %v80 = vld [vmem:[#allocation5 + $0x60] sm:$0xf]
    %v81 = vld [vmem:[#allocation5 + $0x64] sm:$0xf]
    %v82 = vld [vmem:[#allocation5 + $0x68] sm:$0xf]
    %v83 = vld [vmem:[#allocation5 + $0x6c] sm:$0xf]
    %v84 = vld [vmem:[#allocation5 + $0x70] sm:$0xf]
    %v85 = vld [vmem:[#allocation5 + $0x74] sm:$0xf]
    %v86 = vld [vmem:[#allocation5 + $0x78] sm:$0xf]
    %v87 = vld [vmem:[#allocation5 + $0x7c] sm:$0xf]
    %v88 = vld [vmem:[#allocation5 + $0x80] sm:$0xf]
    %v89 = vld [vmem:[#allocation5 + $0x84] sm:$0xf]
    %v90 = vld [vmem:[#allocation5 + $0x88] sm:$0xf]
    %v91 = vld [vmem:[#allocation5 + $0x8c] sm:$0xf]
    %v92 = vld [vmem:[#allocation5 + $0x90] sm:$0xf]
    %v93 = vld [vmem:[#allocation5 + $0x94] sm:$0xf]
    %v94 = vld [vmem:[#allocation5 + $0x98] sm:$0xf]
    %v95 = vld [vmem:[#allocation5 + $0x9c] sm:$0xf]
    %v96 = vld [vmem:[#allocation5 + $0xa0] sm:$0xf]
    %v97 = vld [vmem:[#allocation5 + $0xa4] sm:$0xf]
    %v98 = vld [vmem:[#allocation5 + $0xa8] sm:$0xf]
    %v99 = vld [vmem:[#allocation5 + $0xac] sm:$0xf]
    %v100 = vld [vmem:[#allocation5 + $0xb0] sm:$0xf]
    %v101 = vld [vmem:[#allocation5 + $0xb4] sm:$0xf]
    %v102 = vld [vmem:[#allocation5 + $0xb8] sm:$0xf]
    %v103 = vld [vmem:[#allocation5 + $0xbc] sm:$0xf]
    %v104 = vld [vmem:[#allocation5 + $0xc0] sm:$0xf]
    %v105 = vld [vmem:[#allocation5 + $0xc4] sm:$0xf]
    %v106 = vld [vmem:[#allocation5 + $0xc8] sm:$0xf]
    %v107 = vld [vmem:[#allocation5 + $0xcc] sm:$0xf]
    %v108 = vld [vmem:[#allocation5 + $0xd0] sm:$0xf]
    %v109 = vld [vmem:[#allocation5 + $0xd4] sm:$0xf]
    %v110 = vld [vmem:[#allocation5 + $0xd8] sm:$0xf]
    %v111 = vld [vmem:[#allocation5 + $0xdc] sm:$0xf]
    %v112 = vld [vmem:[#allocation5 + $0xe0] sm:$0xf]
    %v113 = vld [vmem:[#allocation5 + $0xe4] sm:$0xf]
    %v114 = vld [vmem:[#allocation5 + $0xe8] sm:$0xf]
    %v115 = vld [vmem:[#allocation5 + $0xec] sm:$0xf]
    %v116 = vld [vmem:[#allocation5 + $0xf0] sm:$0xf]
    %v117 = vld [vmem:[#allocation5 + $0xf4] sm:$0xf]
    %v118 = vld [vmem:[#allocation5 + $0xf8] sm:$0xf]
    %v119 = vld [vmem:[#allocation5 + $0xfc] sm:$0xf]
    %v120 = vld [vmem:[#allocation5 + $0x100] sm:$0xf]
    %v121 = vld [vmem:[#allocation5 + $0x104] sm:$0xf]
    %v122 = vld [vmem:[#allocation5 + $0x108] sm:$0xf]
    %v123 = vld [vmem:[#allocation5 + $0x10c] sm:$0xf]
    %v124 = vld [vmem:[#allocation5 + $0x110] sm:$0xf]
    %v125 = vld [vmem:[#allocation5 + $0x114] sm:$0xf]
    %v126 = vld [vmem:[#allocation5 + $0x118] sm:$0xf]
    %v127 = vld [vmem:[#allocation5 + $0x11c] sm:$0xf]
    %v128 = vld [vmem:[#allocation5 + $0x120] sm:$0xf]
    %v129 = vld [vmem:[#allocation5 + $0x124] sm:$0xf]
    %v130 = vld [vmem:[#allocation5 + $0x128] sm:$0xf]
    %v131 = vld [vmem:[#allocation5 + $0x12c] sm:$0xf]
    %v132 = vld [vmem:[#allocation5 + $0x130] sm:$0xf]
    %v133 = vld [vmem:[#allocation5 + $0x134] sm:$0xf]
    %v134 = vld [vmem:[#allocation5 + $0x138] sm:$0xf]
    %v135 = vld [vmem:[#allocation5 + $0x13c] sm:$0xf]
    %v136 = vld [vmem:[#allocation5 + $0x140] sm:$0xf]
    %v137 = vld [vmem:[#allocation5 + $0x144] sm:$0xf]
    %v138 = vld [vmem:[#allocation5 + $0x148] sm:$0xf]
    %v139 = vld [vmem:[#allocation5 + $0x14c] sm:$0xf]
    %v140 = vld [vmem:[#allocation5 + $0x150] sm:$0xf]
    %v141 = vld [vmem:[#allocation5 + $0x154] sm:$0xf]
    %v142 = vld [vmem:[#allocation5 + $0x158] sm:$0xf]
    %v143 = vld [vmem:[#allocation5 + $0x15c] sm:$0xf]
    %v144 = vld [vmem:[#allocation5 + $0x160] sm:$0xf]
    %v145 = vld [vmem:[#allocation5 + $0x164] sm:$0xf]
    %v146 = vld [vmem:[#allocation5 + $0x168] sm:$0xf]
    %v147 = vld [vmem:[#allocation5 + $0x16c] sm:$0xf]
    %v148 = vld [vmem:[#allocation5 + $0x170] sm:$0xf]
    %v149 = vld [vmem:[#allocation5 + $0x174] sm:$0xf]
    %v150 = vld [vmem:[#allocation5 + $0x178] sm:$0xf]
    %v151 = vld [vmem:[#allocation5 + $0x17c] sm:$0xf]
    %v152 = vld [vmem:[#allocation5 + $0x180] sm:$0xf]
    %v153 = vld [vmem:[#allocation5 + $0x184] sm:$0xf]
    %v154 = vld [vmem:[#allocation5 + $0x188] sm:$0xf]
    %v155 = vld [vmem:[#allocation5 + $0x18c] sm:$0xf]
    %v156 = vld [vmem:[#allocation5 + $0x190] sm:$0xf]
    %v157 = vld [vmem:[#allocation5 + $0x194] sm:$0xf]
    %v158 = vld [vmem:[#allocation5 + $0x198] sm:$0xf]
    %v159 = vld [vmem:[#allocation5 + $0x19c] sm:$0xf]
    %v160 = vld [vmem:[#allocation5 + $0x1a0] sm:$0xf]
    %v161 = vld [vmem:[#allocation5 + $0x1a4] sm:$0xf]
    %v162 = vld [vmem:[#allocation5 + $0x1a8] sm:$0xf]
    %v163 = vld [vmem:[#allocation5 + $0x1ac] sm:$0xf]
    %v164 = vld [vmem:[#allocation5 + $0x1b0] sm:$0xf]
    %v165 = vld [vmem:[#allocation5 + $0x1b4] sm:$0xf]
    %v166 = vld [vmem:[#allocation5 + $0x1b8] sm:$0xf]
    %v167 = vld [vmem:[#allocation5 + $0x1bc] sm:$0xf]
    %v168 = vld [vmem:[#allocation5 + $0x1c0] sm:$0xf]
    %v169 = vld [vmem:[#allocation5 + $0x1c4] sm:$0xf]
    %v170 = vld [vmem:[#allocation5 + $0x1c8] sm:$0xf]
    %v171 = vld [vmem:[#allocation5 + $0x1cc] sm:$0xf]
    %v172 = vld [vmem:[#allocation5 + $0x1d0] sm:$0xf]
    %v173 = vld [vmem:[#allocation5 + $0x1d4] sm:$0xf]
    %v174 = vld [vmem:[#allocation5 + $0x1d8] sm:$0xf]
    %v175 = vld [vmem:[#allocation5 + $0x1dc] sm:$0xf]
    %v176 = vld [vmem:[#allocation5 + $0x1e0] sm:$0xf]
    %v177 = vld [vmem:[#allocation5 + $0x1e4] sm:$0xf]
    %v178 = vld [vmem:[#allocation5 + $0x1e8] sm:$0xf]
    %v179 = vld [vmem:[#allocation5 + $0x1ec] sm:$0xf]
    %v180 = vld [vmem:[#allocation5 + $0x1f0] sm:$0xf]
    %v181 = vld [vmem:[%s2] sm:$0x1]
    %v183 = vperm.slane %v181, 0
    %186 = vst [vmem:[#allocation1] ss:$9 sm:$0xff] %v48
    %s188 = scalar_lea.vmem [#allocation1], 1
    %189 = vst [vmem:[%s188] ss:$9 sm:$0xff] %v49
    %s191 = scalar_lea.vmem [#allocation1], 2
    %192 = vst [vmem:[%s191] ss:$9 sm:$0xff] %v50
    %s194 = scalar_lea.vmem [#allocation1], 3
    %195 = vst [vmem:[%s194] ss:$9 sm:$0xff] %v51
    %s197 = scalar_lea.vmem [#allocation1], 4
    %198 = vst [vmem:[%s197] ss:$9 sm:$0xff] %v52
    %s200 = scalar_lea.vmem [#allocation1], 5
    %201 = vst [vmem:[%s200] ss:$9 sm:$0xff] %v53
    %s203 = scalar_lea.vmem [#allocation1], 6
    %204 = vst [vmem:[%s203] ss:$9 sm:$0xff] %v54
    %s206 = scalar_lea.vmem [#allocation1], 7
    %207 = vst [vmem:[%s206] ss:$9 sm:$0xff] %v55
    %v208 = vld [vmem:[#allocation1] sm:$0xff]
    %v209 = vld [vmem:[#allocation1 + $0x9] sm:$0xff]
    %v210 = vld [vmem:[#allocation1 + $0x12] sm:$0xff]
    %v211 = vld [vmem:[#allocation1 + $0x1b] sm:$0xff]
    %v212 = vld [vmem:[#allocation1 + $0x24] sm:$0xff]
    %v213 = vld [vmem:[#allocation1 + $0x2d] sm:$0xff]
    %v214 = vld [vmem:[#allocation1 + $0x36] sm:$0xff]
    %v215 = vld [vmem:[#allocation1 + $0x3f] sm:$0xff]
    %v348 = vunpack.c.l.b16 %v56
    %v349 = vunpack.c.l.b16 %v57
    %v350 = vunpack.c.l.b16 %v58
    %v351 = vunpack.c.l.b16 %v59
    %v352 = vunpack.c.l.b16 %v60
    %v353 = vunpack.c.l.b16 %v61
    %v354 = vunpack.c.l.b16 %v62
    %v355 = vunpack.c.l.b16 %v63
    %v356 = vunpack.c.l.b16 %v64
    %v357 = vunpack.c.l.b16 %v65
    %v358 = vunpack.c.l.b16 %v66
    %v359 = vunpack.c.l.b16 %v67
    %v360 = vunpack.c.l.b16 %v68
    %v361 = vunpack.c.l.b16 %v69
    %v362 = vunpack.c.l.b16 %v70
    %v363 = vunpack.c.l.b16 %v71
    %v364 = vunpack.c.l.b16 %v72
    %v365 = vunpack.c.l.b16 %v73
    %v366 = vunpack.c.l.b16 %v74
    %v367 = vunpack.c.l.b16 %v75
    %v368 = vunpack.c.l.b16 %v76
    %v369 = vunpack.c.l.b16 %v77
    %v370 = vunpack.c.l.b16 %v78
    %v371 = vunpack.c.l.b16 %v79
    %v372 = vunpack.c.l.b16 %v80
    %v373 = vunpack.c.l.b16 %v81
    %v374 = vunpack.c.l.b16 %v82
    %v375 = vunpack.c.l.b16 %v83
    %v376 = vunpack.c.l.b16 %v84
    %v377 = vunpack.c.l.b16 %v85
    %v378 = vunpack.c.l.b16 %v86
    %v379 = vunpack.c.l.b16 %v87
    %v380 = vunpack.c.l.b16 %v88
    %v381 = vunpack.c.l.b16 %v89
    %v382 = vunpack.c.l.b16 %v90
    %v383 = vunpack.c.l.b16 %v91
    %v384 = vunpack.c.l.b16 %v92
    %v385 = vunpack.c.l.b16 %v93
    %v386 = vunpack.c.l.b16 %v94
    %v387 = vunpack.c.l.b16 %v95
    %v388 = vunpack.c.l.b16 %v96
    %v389 = vunpack.c.l.b16 %v97
    %v390 = vunpack.c.l.b16 %v98
    %v391 = vunpack.c.l.b16 %v99
    %v392 = vunpack.c.l.b16 %v100
    %v393 = vunpack.c.l.b16 %v101
    %v394 = vunpack.c.l.b16 %v102
    %v395 = vunpack.c.l.b16 %v103
    %v396 = vunpack.c.l.b16 %v104
    %v397 = vunpack.c.l.b16 %v105
    %v398 = vunpack.c.l.b16 %v106
    %v399 = vunpack.c.l.b16 %v107
    %v400 = vunpack.c.l.b16 %v108
    %v401 = vunpack.c.l.b16 %v109
    %v402 = vunpack.c.l.b16 %v110
    %v403 = vunpack.c.l.b16 %v111
    %v404 = vunpack.c.l.b16 %v112
    %v405 = vunpack.c.l.b16 %v113
    %v406 = vunpack.c.l.b16 %v114
    %v407 = vunpack.c.l.b16 %v115
    %v408 = vunpack.c.l.b16 %v116
    %v409 = vunpack.c.l.b16 %v117
    %v410 = vunpack.c.l.b16 %v118
    %v411 = vunpack.c.l.b16 %v119
    %v412 = vunpack.c.l.b16 %v120
    %v413 = vunpack.c.l.b16 %v121
    %v414 = vunpack.c.l.b16 %v122
    %v415 = vunpack.c.l.b16 %v123
    %v416 = vunpack.c.l.b16 %v124
    %v417 = vunpack.c.l.b16 %v125
    %v418 = vunpack.c.l.b16 %v126
    %v419 = vunpack.c.l.b16 %v127
    %v420 = vunpack.c.l.b16 %v128
    %v421 = vunpack.c.l.b16 %v129
    %v422 = vunpack.c.l.b16 %v130
    %v423 = vunpack.c.l.b16 %v131
    %v424 = vunpack.c.l.b16 %v132
    %v425 = vunpack.c.l.b16 %v133
    %v426 = vunpack.c.l.b16 %v134
    %v427 = vunpack.c.l.b16 %v135
    %v428 = vunpack.c.l.b16 %v136
    %v429 = vunpack.c.l.b16 %v137
    %v430 = vunpack.c.l.b16 %v138
    %v431 = vunpack.c.l.b16 %v139
    %v432 = vunpack.c.l.b16 %v140
    %v433 = vunpack.c.l.b16 %v141
    %v434 = vunpack.c.l.b16 %v142
    %v435 = vunpack.c.l.b16 %v143
    %v436 = vunpack.c.l.b16 %v144
    %v437 = vunpack.c.l.b16 %v145
    %v438 = vunpack.c.l.b16 %v146
    %v439 = vunpack.c.l.b16 %v147
    %v440 = vunpack.c.l.b16 %v148
    %v441 = vunpack.c.l.b16 %v149
    %v442 = vunpack.c.l.b16 %v150
    %v443 = vunpack.c.l.b16 %v151
    %v444 = vunpack.c.l.b16 %v152
    %v445 = vunpack.c.l.b16 %v153
    %v446 = vunpack.c.l.b16 %v154
    %v447 = vunpack.c.l.b16 %v155
    %v448 = vunpack.c.l.b16 %v156
    %v449 = vunpack.c.l.b16 %v157
    %v450 = vunpack.c.l.b16 %v158
    %v451 = vunpack.c.l.b16 %v159
    %v452 = vunpack.c.l.b16 %v160
    %v453 = vunpack.c.l.b16 %v161
    %v454 = vunpack.c.l.b16 %v162
    %v455 = vunpack.c.l.b16 %v163
    %v456 = vunpack.c.l.b16 %v164
    %v457 = vunpack.c.l.b16 %v165
    %v458 = vunpack.c.l.b16 %v166
    %v459 = vunpack.c.l.b16 %v167
    %v460 = vunpack.c.l.b16 %v168
    %v461 = vunpack.c.l.b16 %v169
    %v462 = vunpack.c.l.b16 %v170
    %v463 = vunpack.c.l.b16 %v171
    %v464 = vunpack.c.l.b16 %v172
    %v465 = vunpack.c.l.b16 %v173
    %v466 = vunpack.c.l.b16 %v174
    %v467 = vunpack.c.l.b16 %v175
    %v468 = vunpack.c.l.b16 %v176
    %v469 = vunpack.c.l.b16 %v177
    %v470 = vunpack.c.l.b16 %v178
    %v471 = vunpack.c.l.b16 %v179
    %v472 = vunpack.c.l.b16 %v180
    %v473 = vpack.c.b16 %v349, %v348
    %v474 = vpack.c.b16 %v351, %v350
    %v475 = vpack.c.b16 %v353, %v352
    %v476 = vpack.c.b16 %v355, %v354
    %v477 = vpack.c.b16 %v357, %v356
    %v478 = vpack.c.b16 %v359, %v358
    %v479 = vpack.c.b16 %v361, %v360
    %v480 = vpack.c.b16 %v363, %v362
    %v481 = vpack.c.b16 %v365, %v364
    %v482 = vpack.c.b16 %v367, %v366
    %v483 = vpack.c.b16 %v369, %v368
    %v484 = vpack.c.b16 %v371, %v370
    %v485 = vpack.c.b16 %v373, %v372
    %v486 = vpack.c.b16 %v375, %v374
    %v487 = vpack.c.b16 %v377, %v376
    %v488 = vpack.c.b16 %v379, %v378
    %v489 = vpack.c.b16 %v381, %v380
    %v490 = vpack.c.b16 %v383, %v382
    %v491 = vpack.c.b16 %v385, %v384
    %v492 = vpack.c.b16 %v387, %v386
    %v493 = vpack.c.b16 %v389, %v388
    %v494 = vpack.c.b16 %v391, %v390
    %v495 = vpack.c.b16 %v393, %v392
    %v496 = vpack.c.b16 %v395, %v394
    %v497 = vpack.c.b16 %v397, %v396
    %v498 = vpack.c.b16 %v399, %v398
    %v499 = vpack.c.b16 %v401, %v400
    %v500 = vpack.c.b16 %v403, %v402
    %v501 = vpack.c.b16 %v405, %v404
    %v502 = vpack.c.b16 %v407, %v406
    %v503 = vpack.c.b16 %v409, %v408
    %v504 = vpack.c.b16 %v411, %v410
    %v505 = vpack.c.b16 %v413, %v412
    %v506 = vpack.c.b16 %v415, %v414
    %v507 = vpack.c.b16 %v417, %v416
    %v508 = vpack.c.b16 %v419, %v418
    %v509 = vpack.c.b16 %v421, %v420
    %v510 = vpack.c.b16 %v423, %v422
    %v511 = vpack.c.b16 %v425, %v424
    %v512 = vpack.c.b16 %v427, %v426
    %v513 = vpack.c.b16 %v429, %v428
    %v514 = vpack.c.b16 %v431, %v430
    %v515 = vpack.c.b16 %v433, %v432
    %v516 = vpack.c.b16 %v435, %v434
    %v517 = vpack.c.b16 %v437, %v436
    %v518 = vpack.c.b16 %v439, %v438
    %v519 = vpack.c.b16 %v441, %v440
    %v520 = vpack.c.b16 %v443, %v442
    %v521 = vpack.c.b16 %v445, %v444
    %v522 = vpack.c.b16 %v447, %v446
    %v523 = vpack.c.b16 %v449, %v448
    %v524 = vpack.c.b16 %v451, %v450
    %v525 = vpack.c.b16 %v453, %v452
    %v526 = vpack.c.b16 %v455, %v454
    %v527 = vpack.c.b16 %v457, %v456
    %v528 = vpack.c.b16 %v459, %v458
    %v529 = vpack.c.b16 %v461, %v460
    %v530 = vpack.c.b16 %v463, %v462
    %v531 = vpack.c.b16 %v465, %v464
    %v532 = vpack.c.b16 %v467, %v466
    %v533 = vpack.c.b16 %v469, %v468
    %v534 = vpack.c.b16 %v471, %v470
    %v535 = vpack.c.b16 %v472, %v472
    %vm598 = vcmask 850944
    %v599 = vsel %vm598, %v215, 0
    %vm601 = vcmask 1043456
    %v603 = vsel %vm601, %v535, 0
    %605 = vmatpush.bf16.msra.mxu0 %v480
    %606 = vmatpush.bf16.msra.mxu0 %v479
    %607 = vmatpush.bf16.msra.mxu0 %v478
    %608 = vmatpush.bf16.msra.mxu0 %v477
    %609 = vmatpush.bf16.msra.mxu0 %v476
    %610 = vmatpush.bf16.msra.mxu0 %v475
    %611 = vmatpush.bf16.msra.mxu0 %v474
    %612 = vmatpush.bf16.msra.mxu0 %v473
    %613 = vmatmul.bf16.gmra.mxu0 %v208
    %v614 = vpop.f32.mrf.mxu0
    %v615 = vadd.f32 %v183, %v614
    %v616 = vpop.f32.mrf.mxu0
    %v617 = vadd.f32 %v183, %v616
    %618 = vdwg.mxu0
    %619 = vmatpush.bf16.msra.mxu0 %v488
    %620 = vmatpush.bf16.msra.mxu0 %v487
    %621 = vmatpush.bf16.msra.mxu0 %v486
    %622 = vmatpush.bf16.msra.mxu0 %v485
    %623 = vmatpush.bf16.msra.mxu0 %v484
    %624 = vmatpush.bf16.msra.mxu0 %v483
    %625 = vmatpush.bf16.msra.mxu0 %v482
    %626 = vmatpush.bf16.msra.mxu0 %v481
    %627 = vmatmul.bf16.gmra.mxu0 %v209
    %v628 = vpop.f32.mrf.mxu0
    %v629 = vadd.f32 %v615, %v628
    %v630 = vpop.f32.mrf.mxu0
    %v631 = vadd.f32 %v617, %v630
    %632 = vdwg.mxu0
    %633 = vmatpush.bf16.msra.mxu0 %v496
    %634 = vmatpush.bf16.msra.mxu0 %v495
    %635 = vmatpush.bf16.msra.mxu0 %v494
    %636 = vmatpush.bf16.msra.mxu0 %v493
    %637 = vmatpush.bf16.msra.mxu0 %v492
    %638 = vmatpush.bf16.msra.mxu0 %v491
    %639 = vmatpush.bf16.msra.mxu0 %v490
    %640 = vmatpush.bf16.msra.mxu0 %v489
    %641 = vmatmul.bf16.gmra.mxu0 %v210
    %v642 = vpop.f32.mrf.mxu0
    %v643 = vadd.f32 %v629, %v642
    %v644 = vpop.f32.mrf.mxu0
    %v645 = vadd.f32 %v631, %v644
    %646 = vdwg.mxu0
    %647 = vmatpush.bf16.msra.mxu0 %v504
    %648 = vmatpush.bf16.msra.mxu0 %v503
    %649 = vmatpush.bf16.msra.mxu0 %v502
    %650 = vmatpush.bf16.msra.mxu0 %v501
    %651 = vmatpush.bf16.msra.mxu0 %v500
    %652 = vmatpush.bf16.msra.mxu0 %v499
    %653 = vmatpush.bf16.msra.mxu0 %v498
    %654 = vmatpush.bf16.msra.mxu0 %v497
    %655 = vmatmul.bf16.gmra.mxu0 %v211
    %v656 = vpop.f32.mrf.mxu0
    %v657 = vadd.f32 %v643, %v656
    %v658 = vpop.f32.mrf.mxu0
    %v659 = vadd.f32 %v645, %v658
    %660 = vdwg.mxu0
    %661 = vmatpush.bf16.msra.mxu0 %v512
    %662 = vmatpush.bf16.msra.mxu0 %v511
    %663 = vmatpush.bf16.msra.mxu0 %v510
    %664 = vmatpush.bf16.msra.mxu0 %v509
    %665 = vmatpush.bf16.msra.mxu0 %v508
    %666 = vmatpush.bf16.msra.mxu0 %v507
    %667 = vmatpush.bf16.msra.mxu0 %v506
    %668 = vmatpush.bf16.msra.mxu0 %v505
    %669 = vmatmul.bf16.gmra.mxu0 %v212
    %v670 = vpop.f32.mrf.mxu0
    %v671 = vadd.f32 %v657, %v670
    %v672 = vpop.f32.mrf.mxu0
    %v673 = vadd.f32 %v659, %v672
    %674 = vdwg.mxu0
    %675 = vmatpush.bf16.msra.mxu0 %v520
    %676 = vmatpush.bf16.msra.mxu0 %v519
    %677 = vmatpush.bf16.msra.mxu0 %v518
    %678 = vmatpush.bf16.msra.mxu0 %v517
    %679 = vmatpush.bf16.msra.mxu0 %v516
    %680 = vmatpush.bf16.msra.mxu0 %v515
    %681 = vmatpush.bf16.msra.mxu0 %v514
    %682 = vmatpush.bf16.msra.mxu0 %v513
    %683 = vmatmul.bf16.gmra.mxu0 %v213
    %v684 = vpop.f32.mrf.mxu0
    %v685 = vadd.f32 %v671, %v684
    %v686 = vpop.f32.mrf.mxu0
    %v687 = vadd.f32 %v673, %v686
    %688 = vdwg.mxu0
    %689 = vmatpush.bf16.msra.mxu0 %v528
    %690 = vmatpush.bf16.msra.mxu0 %v527
    %691 = vmatpush.bf16.msra.mxu0 %v526
    %692 = vmatpush.bf16.msra.mxu0 %v525
    %693 = vmatpush.bf16.msra.mxu0 %v524
    %694 = vmatpush.bf16.msra.mxu0 %v523
    %695 = vmatpush.bf16.msra.mxu0 %v522
    %696 = vmatpush.bf16.msra.mxu0 %v521
    %697 = vmatmul.bf16.gmra.mxu0 %v214
    %v698 = vpop.f32.mrf.mxu0
    %v699 = vadd.f32 %v685, %v698
    %v700 = vpop.f32.mrf.mxu0
    %v701 = vadd.f32 %v687, %v700
    %702 = vdwg.mxu0
    %703 = vmatpush.bf16.msra.mxu0 0
    %704 = vmatpush.bf16.msra.mxu0 %v603
    %705 = vmatpush.bf16.msra.mxu0 %v534
    %706 = vmatpush.bf16.msra.mxu0 %v533
    %707 = vmatpush.bf16.msra.mxu0 %v532
    %708 = vmatpush.bf16.msra.mxu0 %v531
    %709 = vmatpush.bf16.msra.mxu0 %v530
    %710 = vmatpush.bf16.msra.mxu0 %v529
    %711 = vmatmul.bf16.gmra.mxu0 %v599
    %v712 = vpop.f32.mrf.mxu0
    %v713 = vadd.f32 %v699, %v712
    %v714 = vpop.f32.mrf.mxu0
    %v715 = vadd.f32 %v701, %v714
    %716 = vdwg.mxu0
    %v717 = vmax.f32 %v713, 0.0
    %v718 = vmax.f32 %v715, 0.0
    %719 = vst [vmem:[#allocation7] sm:$0xff] %v717
    %720 = vst [vmem:[#allocation7 + $0x8] sm:$0xff] %v718
    // Predicated region
    $region22: #{tpu_custom_call.1} parent=1 // pred_check
      _
    $region23: #{tpu_custom_call.1} parent=1 // pred_check_branch
      %722 = sbr.rel (0) target = $region25
    $region24: #{tpu_custom_call.1} parent=1 // pred_region
      %724 = vsyncadd [#allocation4], 224
      %s725 = sshll.u32 [#allocation7], 4
      %s726 = int_to_ptr.vmem [resolvable:$true] %s725
      %s727 = sshll.u32 %s3, 4
      %s728 = int_to_ptr.hbm [resolvable:$true] %s727
      %733 = dma.vmem_to_hbm [thread:$0]  %s726, 32, %s728, [#allocation4], 32, 32, 2
    $region25: #{tpu_custom_call.1} parent=1 // pred_fallthru
      _
    // Predicated region
    $region26: #{tpu_custom_call.1} parent=1 // pred_check
      _
    $region27: #{tpu_custom_call.1} parent=1 // pred_check_branch
      %735 = sbr.rel (0) target = $region29
    $region28: #{tpu_custom_call.1} parent=1 // pred_region
      %737 = dma.done [#allocation4], 256
    $region29: #{tpu_custom_call.1} parent=1 // pred_fallthru
      _
    %738 = vsyncpa [#allocation3], 1
    %739 = vsyncpa [#allocation6], 1
    %740 = vsyncpa [#allocation4], 1

</llo_original>
